<compile_context>
chip_gen: v7x
topology: tpu7x:2x2x1
jax: 0.10.0
libtpu: 0.0.40
codegen_flags: <defaults>
</compile_context>

<pallas_src>
import jax
import jax.numpy as jnp
from jax.experimental import pallas as pl
from jax.experimental.pallas import tpu as pltpu

LANE = 128
SUBLANE = 8


def _round_up(n, m):
    return (n + m - 1) // m * m


def _vmem_capacity_bytes():
    try:
        info = pltpu.get_tpu_info()
        cap = getattr(info, "vmem_capacity_bytes", None)
        if cap:
            return int(cap)
    except Exception:
        pass
    return 64 * 1024 * 1024  # conservative: v7x per-TensorCore VMEM


def _spec(block_shape, index_map, *, buffers=None):
    """BlockSpec with an optional buffer count (falls back to default pipelining)."""
    if buffers is None:
        return pl.BlockSpec(block_shape, index_map)
    try:
        return pl.BlockSpec(block_shape, index_map, pipeline_mode=pl.Buffered(buffers))
    except (TypeError, AttributeError):
        return pl.BlockSpec(block_shape, index_map)


# ----------------------------------------------------------------------------
# Kernels
# ----------------------------------------------------------------------------
def mlp_kernel_resident(x_ref, w1_ref, shift_ref, w2_ref, o_ref):
    # x:(tb,dim_p)  w1:(dim_p,hid_p) [BN scale folded]  shift:(1,hid_p)
    # w2:(hid_p,out_p)  o:(tb,out_p)
    h = jnp.dot(x_ref[...], w1_ref[...], preferred_element_type=jnp.float32)
    h = jnp.maximum(h + shift_ref[...], 0.0)            # BN shift + ReLU (f32)
    h = h.astype(w2_ref.dtype)
    y = jnp.dot(h, w2_ref[...], preferred_element_type=jnp.float32)
    o_ref[...] = y.astype(o_ref.dtype)                  # Dropout(eval) == identity


def mlp_kernel_ktiled(x_ref, w1_ref, shift_ref, w2_ref, o_ref, acc_ref):
    # Hidden dim tiled across grid axis 1 (last, "arbitrary"); f32 accumulator.
    kh = pl.program_id(1)

    @pl.when(kh == 0)
    def _():
        acc_ref[...] = jnp.zeros_like(acc_ref)

    h = jnp.dot(x_ref[...], w1_ref[...], preferred_element_type=jnp.float32)
    h = jnp.maximum(h + shift_ref[...], 0.0)
    h = h.astype(w2_ref.dtype)
    acc_ref[...] += jnp.dot(h, w2_ref[...], preferred_element_type=jnp.float32)

    @pl.when(kh == pl.num_programs(1) - 1)
    def _():
        o_ref[...] = acc_ref[...].astype(o_ref.dtype)


# ----------------------------------------------------------------------------
# One-time parameter preparation (hoisted out of the per-call hot path)
# ----------------------------------------------------------------------------
def prepare_mlp_params(w1, gamma, beta, running_mean, running_var, w2, *,
                       eps=1e-5, compute_dtype=None, batch_tile=256,
                       max_hidden_tile=None, vmem_budget_bytes=None):
    """Fold BN, transpose, pad and plan tiling once.  w1:(hidden,dim) w2:(out,hidden)."""
    hidden, dim = w1.shape
    out_dim, hidden2 = w2.shape
    assert hidden2 == hidden

    cdt = jnp.dtype(compute_dtype) if compute_dtype is not None else jnp.dtype(w1.dtype)
    itm = cdt.itemsize
    oit = 4  # plan activations/output conservatively as f32

    # Fold BatchNorm1d (eval) into the first linear layer:
    #   BN(x@W1^T) = (x@W1^T)*scale + shift;  scale = gamma/sqrt(var+eps),
    #   shift = beta - mean*scale.  Scale multiplies columns of W1^T (exact).
    scale = gamma / jnp.sqrt(running_var + eps)                  # (hidden,)
    shift = (beta - running_mean * scale).astype(jnp.float32)    # (hidden,)
    w1t = (w1 * scale[:, None]).T                                # (dim, hidden)
    w2t = w2.T                                                   # (hidden, out)

    dim_p = _round_up(dim, LANE)
    hid_p = _round_up(hidden, LANE)
    out_p = _round_up(out_dim, LANE)

    cap = _vmem_capacity_bytes()
    budget = int(vmem_budget_bytes) if vmem_budget_bytes else int(cap * 0.85)
    vmem_limit = int(max(32 * 1024 * 1024, cap * 0.9))

    tb_pref = max(SUBLANE, _round_up(batch_tile, SUBLANE))

    def resident_bytes(tb_):
        return ((dim_p * hid_p + hid_p * out_p) * itm    # weights, single-buffered
                + hid_p * 4                              # shift, single-buffered
                + 2 * tb_ * dim_p * itm                  # x tile (double-buffered)
                + 2 * tb_ * out_p * oit                  # out tile (double-buffered)
                + 2 * tb_ * hid_p * 4)                   # f32 intermediate + slack

    def ktiled_bytes(tb_, th_):
        return (2 * (dim_p * th_ + th_ * out_p) * itm    # weight tiles (double-buffered)
                + 2 * th_ * 4                            # shift tile
                + 2 * tb_ * dim_p * itm                  # x tile
                + 2 * tb_ * out_p * oit                  # out tile
                + tb_ * out_p * 4                        # f32 accumulator scratch
                + 2 * tb_ * th_ * 4)                     # f32 intermediate + slack

    tb = tb_pref
    th = None
    force_k = max_hidden_tile is not None and max_hidden_tile < hid_p
    if not force_k:
        while tb > SUBLANE and resident_bytes(tb) > budget:
            tb = max(SUBLANE, _round_up(tb // 2, SUBLANE))
        if resident_bytes(tb) > budget:      # weights alone don't fit -> K-tile
            force_k = True
            tb = tb_pref
    if force_k:
        th = hid_p if max_hidden_tile is None else max(
            LANE, _round_up(min(max_hidden_tile, hid_p), LANE))
        while th > LANE and ktiled_bytes(tb, th) > budget:
            th = max(LANE, _round_up(th // 2, LANE))
        while tb > SUBLANE and ktiled_bytes(tb, th) > budget:
            tb = max(SUBLANE, _round_up(tb // 2, SUBLANE))
        hid_p = _round_up(hid_p, th)         # pad hidden to a multiple of the tile

    # Zero padding is exact: padded hidden lanes get shift 0 -> ReLU(0)=0 and
    # zero W2 rows; padded dim/out lanes and padded batch rows are sliced off.
    w1p = jnp.zeros((dim_p, hid_p), cdt).at[:dim, :hidden].set(w1t.astype(cdt))
    w2p = jnp.zeros((hid_p, out_p), cdt).at[:hidden, :out_dim].set(w2t.astype(cdt))
    shp = jnp.zeros((1, hid_p), jnp.float32).at[0, :hidden].set(shift)

    return dict(w1p=w1p, w2p=w2p, shp=shp,
                dim=dim, hidden=hidden, out_dim=out_dim,
                dim_p=dim_p, hid_p=hid_p, out_p=out_p,
                tb=tb, th=th, compute_dtype=cdt, vmem_limit=vmem_limit)


# ----------------------------------------------------------------------------
# Per-call forward
# ----------------------------------------------------------------------------
def mlp_forward_prepared(x, params):
    B, dim = x.shape
    assert dim == params["dim"]
    cdt = params["compute_dtype"]
    dim_p, hid_p, out_p = params["dim_p"], params["hid_p"], params["out_p"]
    out_dim = params["out_dim"]
    th = params["th"]
    out_dtype = x.dtype
    itm = cdt.itemsize
    oit = jnp.dtype(out_dtype).itemsize

    tb = min(params["tb"], _round_up(B, SUBLANE))
    B_p = _round_up(B, tb)
    nb = B_p // tb

    # Skip the padded activation copy when x is already tile/lane aligned.
    if B_p == B and dim_p == dim and x.dtype == cdt:
        xp = x
    else:
        xp = jnp.zeros((B_p, dim_p), cdt).at[:B, :dim].set(x.astype(cdt))

    w1p, shp, w2p = params["w1p"], params["shp"], params["w2p"]

    cost = pl.CostEstimate(
        flops=2 * B_p * dim_p * hid_p + 2 * B_p * hid_p * out_p,
        transcendentals=0,
        bytes_accessed=(B_p * dim_p * itm + dim_p * hid_p * itm
                        + hid_p * out_p * itm + hid_p * 4 + B_p * out_p * oit),
    )

    def run(single_buffer_resident):
        if th is None:
            res_buf = 1 if single_buffer_resident else None
            in_specs = [
                # TODO(synk): bump to pl.Buffered(3) if profiles show exposed x-tile DMA.
                pl.BlockSpec((tb, dim_p), lambda i: (i, 0)),
                _spec((dim_p, hid_p), lambda i: (0, 0), buffers=res_buf),  # resident
                _spec((1, hid_p), lambda i: (0, 0), buffers=res_buf),      # resident
                _spec((hid_p, out_p), lambda i: (0, 0), buffers=res_buf),  # resident
            ]
            out_specs = pl.BlockSpec((tb, out_p), lambda i: (i, 0))
            grid = (nb,)
            scratch = []
            kernel = mlp_kernel_resident
            dims = ("parallel",)
        else:
            in_specs = [
                pl.BlockSpec((tb, dim_p), lambda i, k: (i, 0)),
                pl.BlockSpec((dim_p, th), lambda i, k: (0, k)),
                pl.BlockSpec((1, th), lambda i, k: (0, k)),
                pl.BlockSpec((th, out_p), lambda i, k: (k, 0)),
            ]
            out_specs = pl.BlockSpec((tb, out_p), lambda i, k: (i, 0))
            grid = (nb, hid_p // th)
            scratch = [pltpu.VMEM((tb, out_p), jnp.float32)]
            kernel = mlp_kernel_ktiled
            dims = ("parallel", "arbitrary")

        return pl.pallas_call(
            kernel,
            out_shape=jax.ShapeDtypeStruct((B_p, out_p), out_dtype),
            grid_spec=pltpu.PrefetchScalarGridSpec(
                num_scalar_prefetch=0,
                grid=grid,
                in_specs=in_specs,
                out_specs=out_specs,
                scratch_shapes=scratch,
            ),
            compiler_params=pltpu.CompilerParams(
                dimension_semantics=dims,
                vmem_limit_bytes=params["vmem_limit"],
            ),
            cost_estimate=cost,
        )(xp, w1p, shp, w2p)

    if th is None:
        try:
            y = run(True)
        except Exception:
            # Fallback if this JAX build rejects pl.Buffered(1) on resident inputs.
            y = run(False)
    else:
        y = run(False)

    if B_p == B and out_p == out_dim:
        return y
    return y[:B, :out_dim]


def mlp_forward(x, w1, gamma, beta, running_mean, running_var, w2, *,
                eps=1e-5, compute_dtype=None, batch_tile=256, max_hidden_tile=None):
    """Convenience wrapper (prepares params per call; prefer prepare_mlp_params once)."""
    params = prepare_mlp_params(w1, gamma, beta, running_mean, running_var, w2,
                                eps=eps, compute_dtype=compute_dtype,
                                batch_tile=batch_tile, max_hidden_tile=max_hidden_tile)
    return mlp_forward_prepared(x, params)


def mlp_reference(x, w1, gamma, beta, running_mean, running_var, w2, *, eps=1e-5):
    h = x @ w1.T
    h = (h - running_mean) / jnp.sqrt(running_var + eps) * gamma + beta
    h = jnp.maximum(h, 0.0)
    return h @ w2.T


if __name__ == "__main__":
    key = jax.random.PRNGKey(0)
    keys = jax.random.split(key, 12)
    (kx, k1, k2, kg, kb, km, kv, k12, k22, kg2, kb2, km2) = keys

    # --- Test 1 & 2: small MLP, resident-weight path (f32 and bf16 operands) --
    B, dim, hidden_dim, out_dim = 16, 32, 64, 16
    p_drop = 0.1  # dropout prob (identity in eval mode)

    x = jax.random.normal(kx, (B, dim), dtype=jnp.float32)
    w1 = jax.random.normal(k1, (hidden_dim, dim), dtype=jnp.float32) * 0.1
    w2 = jax.random.normal(k2, (out_dim, hidden_dim), dtype=jnp.float32) * 0.1
    gamma = 1.0 + 0.1 * jax.random.normal(kg, (hidden_dim,), dtype=jnp.float32)
    beta = 0.1 * jax.random.normal(kb, (hidden_dim,), dtype=jnp.float32)
    rmean = 0.1 * jax.random.normal(km, (hidden_dim,), dtype=jnp.float32)
    rvar = jnp.abs(1.0 + 0.1 * jax.random.normal(kv, (hidden_dim,), dtype=jnp.float32))

    y_ref = mlp_reference(x, w1, gamma, beta, rmean, rvar, w2)

    params = prepare_mlp_params(w1, gamma, beta, rmean, rvar, w2)   # once, off hot path
    y = jax.block_until_ready(mlp_forward_prepared(x, params))
    assert y.shape == (B, out_dim)
    assert jnp.allclose(y, y_ref, atol=1e-4, rtol=1e-4), "f32 mismatch vs reference"

    params_bf = prepare_mlp_params(w1, gamma, beta, rmean, rvar, w2,
                                   compute_dtype=jnp.bfloat16)
    y_bf = jax.block_until_ready(mlp_forward_prepared(x, params_bf))
    assert y_bf.shape == (B, out_dim)
    assert jnp.allclose(y_bf, y_ref, atol=5e-2, rtol=5e-2), "bf16 mismatch vs reference"

    # --- Test 3: hidden-dim (K-tiled) accumulator path -------------------------
    hidden_dim2 = 256
    w1b = jax.random.normal(k12, (hidden_dim2, dim), dtype=jnp.float32) * 0.1
    w2b = jax.random.normal(k22, (out_dim, hidden_dim2), dtype=jnp.float32) * 0.1
    gamma2 = 1.0 + 0.1 * jax.random.normal(kg2, (hidden_dim2,), dtype=jnp.float32)
    beta2 = 0.1 * jax.random.normal(kb2, (hidden_dim2,), dtype=jnp.float32)
    rmean2 = 0.1 * jax.random.normal(km2, (hidden_dim2,), dtype=jnp.float32)
    rvar2 = jnp.abs(1.0 + 0.1 * rmean2)

    y_ref2 = mlp_reference(x, w1b, gamma2, beta2, rmean2, rvar2, w2b)
    params_k = prepare_mlp_params(w1b, gamma2, beta2, rmean2, rvar2, w2b,
                                  max_hidden_tile=128)   # forces 2 hidden-tile steps
    assert params_k["th"] == 128
    y2 = jax.block_until_ready(mlp_forward_prepared(x, params_k))
    assert y2.shape == (B, out_dim)
    assert jnp.allclose(y2, y_ref2, atol=1e-4, rtol=1e-4), "K-tiled mismatch vs reference"

    print("KERNEL_OK")
</pallas_src>

<mosaic_0001>
module attributes {stable_mosaic.version = 11 : i64} {
  func.func @mlp_kernel_resident(%arg0: i32, %arg1: memref<16x128xf32, #tpu.memory_space<vmem>>, %arg2: memref<128x128xf32, #tpu.memory_space<vmem>>, %arg3: memref<1x128xf32, #tpu.memory_space<vmem>>, %arg4: memref<128x128xf32, #tpu.memory_space<vmem>>, %arg5: memref<16x128xf32, #tpu.memory_space<vmem>>) attributes {dimension_semantics = [#tpu.dimension_semantics<parallel>], iteration_bounds = array<i64: 1>, scalar_prefetch = 0 : i64, scratch_operands = 0 : i64, tpu.core_type = #tpu.core_type<tc>, window_params = [{transform_indices = @transform_0, window_bounds = array<i64: 16, 128>}, {pipeline_mode = #tpu.pipeline_mode<synchronous>, transform_indices = @transform_1, window_bounds = array<i64: 128, 128>}, {pipeline_mode = #tpu.pipeline_mode<synchronous>, transform_indices = @transform_2, window_bounds = array<i64: 1, 128>}, {pipeline_mode = #tpu.pipeline_mode<synchronous>, transform_indices = @transform_3, window_bounds = array<i64: 128, 128>}, {transform_indices = @transform_4, window_bounds = array<i64: 16, 128>}]} {
    %c0 = arith.constant 0 : index
    %c0_0 = arith.constant 0 : index
    %0 = vector.load %arg1[%c0, %c0_0] : memref<16x128xf32, #tpu.memory_space<vmem>>, vector<16x128xf32>
    %c0_1 = arith.constant 0 : index
    %c0_2 = arith.constant 0 : index
    %1 = vector.load %arg2[%c0_1, %c0_2] : memref<128x128xf32, #tpu.memory_space<vmem>>, vector<128x128xf32>
    %cst = arith.constant dense<0.000000e+00> : vector<16x128xf32>
    %2 = tpu.matmul %0, %1, %cst {dimension_numbers = #tpu.dot_dimension_numbers<[1], [0], [0], [1], [0, 0, 1, 1], [], []>} : vector<16x128xf32>, vector<128x128xf32>, vector<16x128xf32> -> vector<16x128xf32>
    %c0_3 = arith.constant 0 : index
    %c0_4 = arith.constant 0 : index
    %3 = vector.load %arg3[%c0_3, %c0_4] : memref<1x128xf32, #tpu.memory_space<vmem>>, vector<1x128xf32>
    %4 = vector.broadcast %3 : vector<1x128xf32> to vector<16x128xf32>
    %5 = arith.addf %2, %4 : vector<16x128xf32>
    %cst_5 = arith.constant 0.000000e+00 : f32
    %6 = vector.broadcast %cst_5 : f32 to vector<16x128xf32>
    %7 = arith.maximumf %5, %6 : vector<16x128xf32>
    %c0_6 = arith.constant 0 : index
    %c0_7 = arith.constant 0 : index
    %8 = vector.load %arg4[%c0_6, %c0_7] : memref<128x128xf32, #tpu.memory_space<vmem>>, vector<128x128xf32>
    %cst_8 = arith.constant dense<0.000000e+00> : vector<16x128xf32>
    %9 = tpu.matmul %7, %8, %cst_8 {dimension_numbers = #tpu.dot_dimension_numbers<[1], [0], [0], [1], [0, 0, 1, 1], [], []>} : vector<16x128xf32>, vector<128x128xf32>, vector<16x128xf32> -> vector<16x128xf32>
    %c0_9 = arith.constant 0 : index
    %c0_10 = arith.constant 0 : index
    %10 = vector.load %arg5[%c0_9, %c0_10] : memref<16x128xf32, #tpu.memory_space<vmem>>, vector<16x128xf32>
    tpu.vector_store %arg5[%c0_9, %c0_10], %9 {strides = array<i32>} : memref<16x128xf32, #tpu.memory_space<vmem>>, vector<16x128xf32>,
    return
  }
  func.func @transform_0(%arg0: i32) -> (i32, i32) {
    %c0_i32 = arith.constant 0 : i32
    %c0_i32_0 = arith.constant 0 : i32
    return %arg0, %c0_i32 : i32, i32
  }
  func.func @transform_1(%arg0: i32) -> (i32, i32) {
    %c0_i32 = arith.constant 0 : i32
    %c0_i32_0 = arith.constant 0 : i32
    %c0_i32_1 = arith.constant 0 : i32
    return %c0_i32, %c0_i32_0 : i32, i32
  }
  func.func @transform_2(%arg0: i32) -> (i32, i32) {
    %c0_i32 = arith.constant 0 : i32
    %c0_i32_0 = arith.constant 0 : i32
    %c0_i32_1 = arith.constant 0 : i32
    return %c0_i32, %c0_i32_0 : i32, i32
  }
  func.func @transform_3(%arg0: i32) -> (i32, i32) {
    %c0_i32 = arith.constant 0 : i32
    %c0_i32_0 = arith.constant 0 : i32
    %c0_i32_1 = arith.constant 0 : i32
    return %c0_i32, %c0_i32_0 : i32, i32
  }
  func.func @transform_4(%arg0: i32) -> (i32, i32) {
    %c0_i32 = arith.constant 0 : i32
    %c0_i32_0 = arith.constant 0 : i32
    return %arg0, %c0_i32 : i32, i32
  }
}

module attributes {stable_mosaic.version = 11 : i64} {
  func.func @mlp_kernel_resident(%arg0: i32, %arg1: memref<16x128xf32, #tpu.memory_space<vmem>>, %arg2: memref<128x128xf32, #tpu.memory_space<vmem>>, %arg3: memref<1x128xf32, #tpu.memory_space<vmem>>, %arg4: memref<128x128xf32, #tpu.memory_space<vmem>>, %arg5: memref<16x128xf32, #tpu.memory_space<vmem>>) attributes {dimension_semantics = [#tpu.dimension_semantics<parallel>], iteration_bounds = array<i64: 1>, scalar_prefetch = 0 : i64, scratch_operands = 0 : i64, tpu.core_type = #tpu.core_type<tc>, window_params = [{transform_indices = @transform_0, window_bounds = array<i64: 16, 128>}, {pipeline_mode = #tpu.pipeline_mode<synchronous>, transform_indices = @transform_1, window_bounds = array<i64: 128, 128>}, {pipeline_mode = #tpu.pipeline_mode<synchronous>, transform_indices = @transform_2, window_bounds = array<i64: 1, 128>}, {pipeline_mode = #tpu.pipeline_mode<synchronous>, transform_indices = @transform_3, window_bounds = array<i64: 128, 128>}, {transform_indices = @transform_4, window_bounds = array<i64: 16, 128>}]} {
    %c0 = arith.constant 0 : index
    %c0_0 = arith.constant 0 : index
    %0 = vector.load %arg1[%c0, %c0_0] : memref<16x128xf32, #tpu.memory_space<vmem>>, vector<16x128xf32>
    %c0_1 = arith.constant 0 : index
    %c0_2 = arith.constant 0 : index
    %1 = vector.load %arg2[%c0_1, %c0_2] : memref<128x128xf32, #tpu.memory_space<vmem>>, vector<128x128xf32>
    %cst = arith.constant dense<0.000000e+00> : vector<16x128xf32>
    %2 = tpu.matmul %0, %1, %cst {dimension_numbers = #tpu.dot_dimension_numbers<[1], [0], [0], [1], [0, 0, 1, 1], [], []>} : vector<16x128xf32>, vector<128x128xf32>, vector<16x128xf32> -> vector<16x128xf32>
    %c0_3 = arith.constant 0 : index
    %c0_4 = arith.constant 0 : index
    %3 = vector.load %arg3[%c0_3, %c0_4] : memref<1x128xf32, #tpu.memory_space<vmem>>, vector<1x128xf32>
    %4 = vector.broadcast %3 : vector<1x128xf32> to vector<16x128xf32>
    %5 = arith.addf %2, %4 : vector<16x128xf32>
    %cst_5 = arith.constant 0.000000e+00 : f32
    %6 = vector.broadcast %cst_5 : f32 to vector<16x128xf32>
    %7 = arith.maximumf %5, %6 : vector<16x128xf32>
    %c0_6 = arith.constant 0 : index
    %c0_7 = arith.constant 0 : index
    %8 = vector.load %arg4[%c0_6, %c0_7] : memref<128x128xf32, #tpu.memory_space<vmem>>, vector<128x128xf32>
    %cst_8 = arith.constant dense<0.000000e+00> : vector<16x128xf32>
    %9 = tpu.matmul %7, %8, %cst_8 {dimension_numbers = #tpu.dot_dimension_numbers<[1], [0], [0], [1], [0, 0, 1, 1], [], []>} : vector<16x128xf32>, vector<128x128xf32>, vector<16x128xf32> -> vector<16x128xf32>
    %c0_9 = arith.constant 0 : index
    %c0_10 = arith.constant 0 : index
    %10 = vector.load %arg5[%c0_9, %c0_10] : memref<16x128xf32, #tpu.memory_space<vmem>>, vector<16x128xf32>
    tpu.vector_store %arg5[%c0_9, %c0_10], %9 {strides = array<i32>} : memref<16x128xf32, #tpu.memory_space<vmem>>, vector<16x128xf32>,
    return
  }
  func.func @transform_0(%arg0: i32) -> (i32, i32) {
    %c0_i32 = arith.constant 0 : i32
    %c0_i32_0 = arith.constant 0 : i32
    return %arg0, %c0_i32 : i32, i32
  }
  func.func @transform_1(%arg0: i32) -> (i32, i32) {
    %c0_i32 = arith.constant 0 : i32
    %c0_i32_0 = arith.constant 0 : i32
    %c0_i32_1 = arith.constant 0 : i32
    return %c0_i32, %c0_i32_0 : i32, i32
  }
  func.func @transform_2(%arg0: i32) -> (i32, i32) {
    %c0_i32 = arith.constant 0 : i32
    %c0_i32_0 = arith.constant 0 : i32
    %c0_i32_1 = arith.constant 0 : i32
    return %c0_i32, %c0_i32_0 : i32, i32
  }
  func.func @transform_3(%arg0: i32) -> (i32, i32) {
    %c0_i32 = arith.constant 0 : i32
    %c0_i32_0 = arith.constant 0 : i32
    %c0_i32_1 = arith.constant 0 : i32
    return %c0_i32, %c0_i32_0 : i32, i32
  }
  func.func @transform_4(%arg0: i32) -> (i32, i32) {
    %c0_i32 = arith.constant 0 : i32
    %c0_i32_0 = arith.constant 0 : i32
    return %arg0, %c0_i32 : i32, i32
  }
}

</mosaic_0001>

<llo_original>
// kernel: tpu_custom_call.1
$region0: #{tpu_custom_call.1}
  #allocation0 [shape = 'u32[]', space=smem, size = 0x4, offset = 0x4, fixed_abs, tag = 'smem constant byte address 0x4 - core index']
  #allocation1 [shape = 'u32[144,128]{1,0:T(1,128)}', space=vmem, size = 0x12000, scoped, tag = 'internal scratch']
  %s0 = inlined_call_operand.hbm [shape: f32[16,128], index: 0, kind: input, shape index: {}]
  %s1 = inlined_call_operand.hbm [shape: f32[128,128], index: 1, kind: input, shape index: {}]
  %s2 = inlined_call_operand.vmem [shape: f32[1,128], index: 2, kind: input, shape index: {}]
  %s3 = inlined_call_operand.hbm [shape: f32[128,128], index: 3, kind: input, shape index: {}]
  %s4 = inlined_call_operand.hbm [shape: f32[16,128], index: 4, kind: output, shape index: {}]
  %s5 = sld [smem:[#allocation0]]
  $region38: #{tpu_custom_call.1} parent=0
    _
  %s7 = ssub.s32 1, %s5
  %s8 = scalar_select 0, %s7, %s5
  $region1: #{tpu_custom_call.1} parent=0
    #allocation2 [shape = 'u8[8192]{0}', space=vmem, size = 0x2000, scoped, tag = 'input window, operand 0, single buffered']
    #allocation3 [shape = 's32[1]{0}', space=sflag, size = 0x4, scoped, tag = 'scoped memory for tpu_custom_call.1']
    #allocation4 [shape = 's32[1]{0}', space=sflag, size = 0x4, scoped, tag = 'scoped memory for tpu_custom_call.1']
    #allocation5 [shape = 'u8[65536]{0}', space=vmem, size = 0x10000, scoped, tag = 'input window, operand 1, single buffered']
    #allocation6 [shape = 's32[1]{0}', space=sflag, size = 0x4, scoped, tag = 'scoped memory for tpu_custom_call.1']
    #allocation7 [shape = 'u8[65536]{0}', space=vmem, size = 0x10000, scoped, tag = 'input window, operand 3, single buffered']
    #allocation8 [shape = 'u8[8192]{0}', space=vmem, size = 0x2000, scoped, tag = 'output window, operand 0, single buffered']
    %9 = vsyncpa [#allocation3], 0
    %10 = vsyncpa [#allocation6], 0
    %11 = vsyncpa [#allocation4], 0
    // Predicated region
    $region2: #{tpu_custom_call.1} parent=1 // pred_check
      _
    $region3: #{tpu_custom_call.1} parent=1 // pred_check_branch
      %13 = sbr.rel (0) target = $region5
    $region4: #{tpu_custom_call.1} parent=1 // pred_region
      %s15 = ssub.s32 256, 256
      %16 = vsyncadd [#allocation3], %s15
      %s17 = sshll.u32 [#allocation2], 4
      %s18 = int_to_ptr.vmem [resolvable:$true] %s17
      %23 = dma.hbm_to_vmem [thread:$0]  %s0, 256, %s18, [#allocation3], 128, 128, 8
    $region5: #{tpu_custom_call.1} parent=1 // pred_fallthru
      _
    // Predicated region
    $region6: #{tpu_custom_call.1} parent=1 // pred_check
      _
    $region7: #{tpu_custom_call.1} parent=1 // pred_check_branch
      %25 = sbr.rel (0) target = $region9
    $region8: #{tpu_custom_call.1} parent=1 // pred_region
      %s27 = ssub.s32 2048, 2048
      %28 = vsyncadd [#allocation6], %s27
      %s29 = sshll.u32 [#allocation5], 4
      %s30 = int_to_ptr.vmem [resolvable:$true] %s29
      %35 = dma.hbm_to_vmem [thread:$0]  %s1, 2048, %s30, [#allocation6], 128, 128, 8
    $region9: #{tpu_custom_call.1} parent=1 // pred_fallthru
      _
    // Predicated region
    $region10: #{tpu_custom_call.1} parent=1 // pred_check
      _
    $region11: #{tpu_custom_call.1} parent=1 // pred_check_branch
      %37 = sbr.rel (0) target = $region13
    $region12: #{tpu_custom_call.1} parent=1 // pred_region
      _
    $region13: #{tpu_custom_call.1} parent=1 // pred_fallthru
      _
    // Predicated region
    $region14: #{tpu_custom_call.1} parent=1 // pred_check
      _
    $region15: #{tpu_custom_call.1} parent=1 // pred_check_branch
      %39 = sbr.rel (0) target = $region17
    $region16: #{tpu_custom_call.1} parent=1 // pred_region
      %s41 = ssub.s32 2048, 2048
      %42 = vsyncadd [#allocation6], %s41
      %s43 = sshll.u32 [#allocation7], 4
      %s44 = int_to_ptr.vmem [resolvable:$true] %s43
      %49 = dma.hbm_to_vmem [thread:$0]  %s3, 2048, %s44, [#allocation6], 128, 128, 8
    $region17: #{tpu_custom_call.1} parent=1 // pred_fallthru
      _
    // Predicated region
    $region18: #{tpu_custom_call.1} parent=1 // pred_check
      _
    $region19: #{tpu_custom_call.1} parent=1 // pred_check_branch
      %51 = sbr.rel (0) target = $region21
    $region20: #{tpu_custom_call.1} parent=1 // pred_region
      %52 = dma.done [#allocation3], 256
    $region21: #{tpu_custom_call.1} parent=1 // pred_fallthru
      _
    // Predicated region
    $region22: #{tpu_custom_call.1} parent=1 // pred_check
      _
    $region23: #{tpu_custom_call.1} parent=1 // pred_check_branch
      %54 = sbr.rel (0) target = $region25
    $region24: #{tpu_custom_call.1} parent=1 // pred_region
      %55 = dma.done [#allocation6], 2048
    $region25: #{tpu_custom_call.1} parent=1 // pred_fallthru
      _
    // Predicated region
    $region26: #{tpu_custom_call.1} parent=1 // pred_check
      _
    $region27: #{tpu_custom_call.1} parent=1 // pred_check_branch
      %57 = sbr.rel (0) target = $region29
    $region28: #{tpu_custom_call.1} parent=1 // pred_region
      %58 = dma.done [#allocation6], 2048
    $region29: #{tpu_custom_call.1} parent=1 // pred_fallthru
      _
    %v59 = vld [vmem:[#allocation2] sm:$0xff]
    %v60 = vld [vmem:[#allocation2 + $0x8] sm:$0xff]
    %v61 = vld [vmem:[#allocation5] sm:$0xff]
    %v62 = vld [vmem:[#allocation5 + $0x8] sm:$0xff]
    %v63 = vld [vmem:[#allocation5 + $0x10] sm:$0xff]
    %v64 = vld [vmem:[#allocation5 + $0x18] sm:$0xff]
    %v65 = vld [vmem:[#allocation5 + $0x20] sm:$0xff]
    %v66 = vld [vmem:[#allocation5 + $0x28] sm:$0xff]
    %v67 = vld [vmem:[#allocation5 + $0x30] sm:$0xff]
    %v68 = vld [vmem:[#allocation5 + $0x38] sm:$0xff]
    %v69 = vld [vmem:[#allocation5 + $0x40] sm:$0xff]
    %v70 = vld [vmem:[#allocation5 + $0x48] sm:$0xff]
    %v71 = vld [vmem:[#allocation5 + $0x50] sm:$0xff]
    %v72 = vld [vmem:[#allocation5 + $0x58] sm:$0xff]
    %v73 = vld [vmem:[#allocation5 + $0x60] sm:$0xff]
    %v74 = vld [vmem:[#allocation5 + $0x68] sm:$0xff]
    %v75 = vld [vmem:[#allocation5 + $0x70] sm:$0xff]
    %v76 = vld [vmem:[#allocation5 + $0x78] sm:$0xff]
    %v77 = vld [vmem:[%s2] sm:$0x1]
    %v79 = vlaneseq
    %v80 = vshrl.u32 %v79, 7
    %v81 = vsub.s32 0, %v80
    %v82 = vrot.slane %v77, %v81
    %84 = vmatprep.subr.mxu0 0.0
    %85 = vmatpush1.msra.mxu0 %v61
    %86 = vmatprep.subr.mxu0 0.0
    %87 = vmatpush1.msra.mxu0 %v62
    %88 = vmatprep.subr.mxu0 0.0
    %89 = vmatpush1.msra.mxu0 %v63
    %90 = vmatprep.subr.mxu0 0.0
    %91 = vmatpush1.msra.mxu0 %v64
    %92 = vmatprep.subr.mxu0 0.0
    %93 = vmatpush1.msra.mxu0 %v65
    %94 = vmatprep.subr.mxu0 0.0
    %95 = vmatpush1.msra.mxu0 %v66
    %96 = vmatprep.subr.mxu0 0.0
    %97 = vmatpush1.msra.mxu0 %v67
    %98 = vmatprep.subr.mxu0 0.0
    %99 = vmatpush1.msra.mxu0 %v68
    %100 = vmatprep.subr.mxu0 0.0
    %101 = vmatpush1.msra.mxu0 %v69
    %102 = vmatprep.subr.mxu0 0.0
    %103 = vmatpush1.msra.mxu0 %v70
    %104 = vmatprep.subr.mxu0 0.0
    %105 = vmatpush1.msra.mxu0 %v71
    %106 = vmatprep.subr.mxu0 0.0
    %107 = vmatpush1.msra.mxu0 %v72
    %108 = vmatprep.subr.mxu0 0.0
    %109 = vmatpush1.msra.mxu0 %v73
    %110 = vmatprep.subr.mxu0 0.0
    %111 = vmatpush1.msra.mxu0 %v74
    %112 = vmatprep.subr.mxu0 0.0
    %113 = vmatpush1.msra.mxu0 %v75
    %114 = vmatprep.subr.mxu0 0.0
    %115 = vmatpush1.msra.mxu0 %v76
    %116 = vmatprep.subr.mxu0 0.0
    %117 = vmatpush1.msra.mxu0 0.0
    %118 = vmatprep.subr.mxu0 0.0
    %119 = vmatpush1.msra.mxu0 0.0
    %120 = vmatprep.subr.mxu0 0.0
    %121 = vmatpush1.msra.mxu0 0.0
    %122 = vmatprep.subr.mxu0 0.0
    %123 = vmatpush1.msra.mxu0 0.0
    %124 = vmatprep.subr.mxu0 0.0
    %125 = vmatpush1.msra.mxu0 0.0
    %126 = vmatprep.subr.mxu0 0.0
    %127 = vmatpush1.msra.mxu0 0.0
    %128 = vmatprep.subr.mxu0 0.0
    %129 = vmatpush1.msra.mxu0 0.0
    %130 = vmatprep.subr.mxu0 0.0
    %131 = vmatpush1.msra.mxu0 0.0
    %132 = vmatprep.subr.mxu0 0.0
    %133 = vmatpush1.msra.mxu0 0.0
    %134 = vmatprep.subr.mxu0 0.0
    %135 = vmatpush1.msra.mxu0 0.0
    %136 = vmatprep.subr.mxu0 0.0
    %137 = vmatpush1.msra.mxu0 0.0
    %138 = vmatprep.subr.mxu0 0.0
    %139 = vmatpush1.msra.mxu0 0.0
    %140 = vmatprep.subr.mxu0 0.0
    %141 = vmatpush1.msra.mxu0 0.0
    %142 = vmatprep.subr.mxu0 0.0
    %143 = vmatpush1.msra.mxu0 0.0
    %144 = vmatprep.subr.mxu0 0.0
    %145 = vmatpush1.msra.mxu0 0.0
    %146 = vmatprep.subr.mxu0 0.0
    %147 = vmatpush1.msra.mxu0 0.0
    %148 = vmatprep.mubr.f32.mxu0 0.0
    %149 = vmatmul.mubr.f32.gmra.mrb[0].mxu0 %v59
    %v150 = vpop.f32.mrb[0].mxu0
    %v151 = vadd.f32 %v82, %v150
    %v152 = vpop.f32.mrb[0].mxu0
    %153 = vmatprep.mubr.f32.mxu0 0.0
    %154 = vmatmul.mubr.f32.gmra.mrb[0].mxu0 %v60
    %v155 = vpop.f32.mrb[0].mxu0
    %v156 = vadd.f32 %v82, %v155
    %v157 = vpop.f32.mrb[0].mxu0
    %158 = vdwg.mxu0
    %v159 = vmax.f32 %v151, 0.0
    %v160 = vmax.f32 %v156, 0.0
    %v161 = vld [vmem:[#allocation7] sm:$0xff]
    %v162 = vld [vmem:[#allocation7 + $0x8] sm:$0xff]
    %v163 = vld [vmem:[#allocation7 + $0x10] sm:$0xff]
    %v164 = vld [vmem:[#allocation7 + $0x18] sm:$0xff]
    %v165 = vld [vmem:[#allocation7 + $0x20] sm:$0xff]
    %v166 = vld [vmem:[#allocation7 + $0x28] sm:$0xff]
    %v167 = vld [vmem:[#allocation7 + $0x30] sm:$0xff]
    %v168 = vld [vmem:[#allocation7 + $0x38] sm:$0xff]
    %v169 = vld [vmem:[#allocation7 + $0x40] sm:$0xff]
    %v170 = vld [vmem:[#allocation7 + $0x48] sm:$0xff]
    %v171 = vld [vmem:[#allocation7 + $0x50] sm:$0xff]
    %v172 = vld [vmem:[#allocation7 + $0x58] sm:$0xff]
    %v173 = vld [vmem:[#allocation7 + $0x60] sm:$0xff]
    %v174 = vld [vmem:[#allocation7 + $0x68] sm:$0xff]
    %v175 = vld [vmem:[#allocation7 + $0x70] sm:$0xff]
    %v176 = vld [vmem:[#allocation7 + $0x78] sm:$0xff]
    %177 = vmatprep.subr.mxu0 0.0
    %178 = vmatpush1.msra.mxu0 %v161
    %179 = vmatprep.subr.mxu0 0.0
    %180 = vmatpush1.msra.mxu0 %v162
    %181 = vmatprep.subr.mxu0 0.0
    %182 = vmatpush1.msra.mxu0 %v163
    %183 = vmatprep.subr.mxu0 0.0
    %184 = vmatpush1.msra.mxu0 %v164
    %185 = vmatprep.subr.mxu0 0.0
    %186 = vmatpush1.msra.mxu0 %v165
    %187 = vmatprep.subr.mxu0 0.0
    %188 = vmatpush1.msra.mxu0 %v166
    %189 = vmatprep.subr.mxu0 0.0
    %190 = vmatpush1.msra.mxu0 %v167
    %191 = vmatprep.subr.mxu0 0.0
    %192 = vmatpush1.msra.mxu0 %v168
    %193 = vmatprep.subr.mxu0 0.0
    %194 = vmatpush1.msra.mxu0 %v169
    %195 = vmatprep.subr.mxu0 0.0
    %196 = vmatpush1.msra.mxu0 %v170
    %197 = vmatprep.subr.mxu0 0.0
    %198 = vmatpush1.msra.mxu0 %v171
    %199 = vmatprep.subr.mxu0 0.0
    %200 = vmatpush1.msra.mxu0 %v172
    %201 = vmatprep.subr.mxu0 0.0
    %202 = vmatpush1.msra.mxu0 %v173
    %203 = vmatprep.subr.mxu0 0.0
    %204 = vmatpush1.msra.mxu0 %v174
    %205 = vmatprep.subr.mxu0 0.0
    %206 = vmatpush1.msra.mxu0 %v175
    %207 = vmatprep.subr.mxu0 0.0
    %208 = vmatpush1.msra.mxu0 %v176
    %209 = vmatprep.subr.mxu0 0.0
    %210 = vmatpush1.msra.mxu0 0.0
    %211 = vmatprep.subr.mxu0 0.0
    %212 = vmatpush1.msra.mxu0 0.0
    %213 = vmatprep.subr.mxu0 0.0
    %214 = vmatpush1.msra.mxu0 0.0
    %215 = vmatprep.subr.mxu0 0.0
    %216 = vmatpush1.msra.mxu0 0.0
    %217 = vmatprep.subr.mxu0 0.0
    %218 = vmatpush1.msra.mxu0 0.0
    %219 = vmatprep.subr.mxu0 0.0
    %220 = vmatpush1.msra.mxu0 0.0
    %221 = vmatprep.subr.mxu0 0.0
    %222 = vmatpush1.msra.mxu0 0.0
    %223 = vmatprep.subr.mxu0 0.0
    %224 = vmatpush1.msra.mxu0 0.0
    %225 = vmatprep.subr.mxu0 0.0
    %226 = vmatpush1.msra.mxu0 0.0
    %227 = vmatprep.subr.mxu0 0.0
    %228 = vmatpush1.msra.mxu0 0.0
    %229 = vmatprep.subr.mxu0 0.0
    %230 = vmatpush1.msra.mxu0 0.0
    %231 = vmatprep.subr.mxu0 0.0
    %232 = vmatpush1.msra.mxu0 0.0
    %233 = vmatprep.subr.mxu0 0.0
    %234 = vmatpush1.msra.mxu0 0.0
    %235 = vmatprep.subr.mxu0 0.0
    %236 = vmatpush1.msra.mxu0 0.0
    %237 = vmatprep.subr.mxu0 0.0
    %238 = vmatpush1.msra.mxu0 0.0
    %239 = vmatprep.subr.mxu0 0.0
    %240 = vmatpush1.msra.mxu0 0.0
    %241 = vmatprep.mubr.f32.mxu0 0.0
    %242 = vmatmul.mubr.f32.gmra.mrb[0].mxu0 %v159
    %v243 = vpop.f32.mrb[0].mxu0
    %v244 = vadd.f32 0.0, %v243
    %v245 = vpop.f32.mrb[0].mxu0
    %246 = vmatprep.mubr.f32.mxu0 0.0
    %247 = vmatmul.mubr.f32.gmra.mrb[0].mxu0 %v160
    %v248 = vpop.f32.mrb[0].mxu0
    %v249 = vadd.f32 0.0, %v248
    %v250 = vpop.f32.mrb[0].mxu0
    %251 = vdwg.mxu0
    %252 = vst [vmem:[#allocation8] sm:$0xff] %v244
    %253 = vst [vmem:[#allocation8 + $0x8] sm:$0xff] %v249
    // Predicated region
    $region30: #{tpu_custom_call.1} parent=1 // pred_check
      _
    $region31: #{tpu_custom_call.1} parent=1 // pred_check_branch
      %255 = sbr.rel (0) target = $region33
    $region32: #{tpu_custom_call.1} parent=1 // pred_region
      %s257 = ssub.s32 256, 256
      %258 = vsyncadd [#allocation4], %s257
      %s259 = sshll.u32 [#allocation8], 4
      %s260 = int_to_ptr.vmem [resolvable:$true] %s259
      %265 = dma.vmem_to_hbm [thread:$0]  %s260, 256, %s4, [#allocation4], 128, 128, 8
    $region33: #{tpu_custom_call.1} parent=1 // pred_fallthru
      _
    // Predicated region
    $region34: #{tpu_custom_call.1} parent=1 // pred_check
      _
    $region35: #{tpu_custom_call.1} parent=1 // pred_check_branch
      %267 = sbr.rel (0) target = $region37
    $region36: #{tpu_custom_call.1} parent=1 // pred_region
      %268 = dma.done [#allocation4], 256
    $region37: #{tpu_custom_call.1} parent=1 // pred_fallthru
      _
    %269 = vsyncpa [#allocation3], 1
    %270 = vsyncpa [#allocation6], 1
    %271 = vsyncpa [#allocation4], 1

// kernel: tpu_custom_call.1
$region0: #{tpu_custom_call.1}
  #allocation0 [shape = 'u32[]', space=smem, size = 0x4, offset = 0x4, fixed_abs, tag = 'smem constant byte address 0x4 - core index']
  #allocation1 [shape = 'u32[144,128]{1,0:T(1,128)}', space=vmem, size = 0x12000, scoped, tag = 'internal scratch']
  %s0 = inlined_call_operand.hbm [shape: f32[16,128], index: 0, kind: input, shape index: {}]
  %s1 = inlined_call_operand.hbm [shape: f32[128,128], index: 1, kind: input, shape index: {}]
  %s2 = inlined_call_operand.vmem [shape: f32[1,128], index: 2, kind: input, shape index: {}]
  %s3 = inlined_call_operand.hbm [shape: f32[128,128], index: 3, kind: input, shape index: {}]
  %s4 = inlined_call_operand.hbm [shape: f32[16,128], index: 4, kind: output, shape index: {}]
  %s5 = sld [smem:[#allocation0]]
  $region38: #{tpu_custom_call.1} parent=0
    _
  %s7 = ssub.s32 1, %s5
  %s8 = scalar_select 0, %s7, %s5
  $region1: #{tpu_custom_call.1} parent=0
    #allocation2 [shape = 'u8[8192]{0}', space=vmem, size = 0x2000, scoped, tag = 'input window, operand 0, single buffered']
    #allocation3 [shape = 's32[1]{0}', space=sflag, size = 0x4, scoped, tag = 'scoped memory for tpu_custom_call.1']
    #allocation4 [shape = 's32[1]{0}', space=sflag, size = 0x4, scoped, tag = 'scoped memory for tpu_custom_call.1']
    #allocation5 [shape = 'u8[65536]{0}', space=vmem, size = 0x10000, scoped, tag = 'input window, operand 1, single buffered']
    #allocation6 [shape = 's32[1]{0}', space=sflag, size = 0x4, scoped, tag = 'scoped memory for tpu_custom_call.1']
    #allocation7 [shape = 'u8[65536]{0}', space=vmem, size = 0x10000, scoped, tag = 'input window, operand 3, single buffered']
    #allocation8 [shape = 'u8[8192]{0}', space=vmem, size = 0x2000, scoped, tag = 'output window, operand 0, single buffered']
    %9 = vsyncpa [#allocation3], 0
    %10 = vsyncpa [#allocation6], 0
    %11 = vsyncpa [#allocation4], 0
    // Predicated region
    $region2: #{tpu_custom_call.1} parent=1 // pred_check
      _
    $region3: #{tpu_custom_call.1} parent=1 // pred_check_branch
      %13 = sbr.rel (0) target = $region5
    $region4: #{tpu_custom_call.1} parent=1 // pred_region
      %s15 = ssub.s32 256, 256
      %16 = vsyncadd [#allocation3], %s15
      %s17 = sshll.u32 [#allocation2], 4
      %s18 = int_to_ptr.vmem [resolvable:$true] %s17
      %23 = dma.hbm_to_vmem [thread:$0]  %s0, 256, %s18, [#allocation3], 128, 128, 8
    $region5: #{tpu_custom_call.1} parent=1 // pred_fallthru
      _
    // Predicated region
    $region6: #{tpu_custom_call.1} parent=1 // pred_check
      _
    $region7: #{tpu_custom_call.1} parent=1 // pred_check_branch
      %25 = sbr.rel (0) target = $region9
    $region8: #{tpu_custom_call.1} parent=1 // pred_region
      %s27 = ssub.s32 2048, 2048
      %28 = vsyncadd [#allocation6], %s27
      %s29 = sshll.u32 [#allocation5], 4
      %s30 = int_to_ptr.vmem [resolvable:$true] %s29
      %35 = dma.hbm_to_vmem [thread:$0]  %s1, 2048, %s30, [#allocation6], 128, 128, 8
    $region9: #{tpu_custom_call.1} parent=1 // pred_fallthru
      _
    // Predicated region
    $region10: #{tpu_custom_call.1} parent=1 // pred_check
      _
    $region11: #{tpu_custom_call.1} parent=1 // pred_check_branch
      %37 = sbr.rel (0) target = $region13
    $region12: #{tpu_custom_call.1} parent=1 // pred_region
      _
    $region13: #{tpu_custom_call.1} parent=1 // pred_fallthru
      _
    // Predicated region
    $region14: #{tpu_custom_call.1} parent=1 // pred_check
      _
    $region15: #{tpu_custom_call.1} parent=1 // pred_check_branch
      %39 = sbr.rel (0) target = $region17
    $region16: #{tpu_custom_call.1} parent=1 // pred_region
      %s41 = ssub.s32 2048, 2048
      %42 = vsyncadd [#allocation6], %s41
      %s43 = sshll.u32 [#allocation7], 4
      %s44 = int_to_ptr.vmem [resolvable:$true] %s43
      %49 = dma.hbm_to_vmem [thread:$0]  %s3, 2048, %s44, [#allocation6], 128, 128, 8
    $region17: #{tpu_custom_call.1} parent=1 // pred_fallthru
      _
    // Predicated region
    $region18: #{tpu_custom_call.1} parent=1 // pred_check
      _
    $region19: #{tpu_custom_call.1} parent=1 // pred_check_branch
      %51 = sbr.rel (0) target = $region21
    $region20: #{tpu_custom_call.1} parent=1 // pred_region
      %52 = dma.done [#allocation3], 256
    $region21: #{tpu_custom_call.1} parent=1 // pred_fallthru
      _
    // Predicated region
    $region22: #{tpu_custom_call.1} parent=1 // pred_check
      _
    $region23: #{tpu_custom_call.1} parent=1 // pred_check_branch
      %54 = sbr.rel (0) target = $region25
    $region24: #{tpu_custom_call.1} parent=1 // pred_region
      %55 = dma.done [#allocation6], 2048
    $region25: #{tpu_custom_call.1} parent=1 // pred_fallthru
      _
    // Predicated region
    $region26: #{tpu_custom_call.1} parent=1 // pred_check
      _
    $region27: #{tpu_custom_call.1} parent=1 // pred_check_branch
      %57 = sbr.rel (0) target = $region29
    $region28: #{tpu_custom_call.1} parent=1 // pred_region
      %58 = dma.done [#allocation6], 2048
    $region29: #{tpu_custom_call.1} parent=1 // pred_fallthru
      _
    %v59 = vld [vmem:[#allocation2] sm:$0xff]
    %v60 = vld [vmem:[#allocation2 + $0x8] sm:$0xff]
    %v61 = vld [vmem:[#allocation5] sm:$0xff]
    %v62 = vld [vmem:[#allocation5 + $0x8] sm:$0xff]
    %v63 = vld [vmem:[#allocation5 + $0x10] sm:$0xff]
    %v64 = vld [vmem:[#allocation5 + $0x18] sm:$0xff]
    %v65 = vld [vmem:[#allocation5 + $0x20] sm:$0xff]
    %v66 = vld [vmem:[#allocation5 + $0x28] sm:$0xff]
    %v67 = vld [vmem:[#allocation5 + $0x30] sm:$0xff]
    %v68 = vld [vmem:[#allocation5 + $0x38] sm:$0xff]
    %v69 = vld [vmem:[#allocation5 + $0x40] sm:$0xff]
    %v70 = vld [vmem:[#allocation5 + $0x48] sm:$0xff]
    %v71 = vld [vmem:[#allocation5 + $0x50] sm:$0xff]
    %v72 = vld [vmem:[#allocation5 + $0x58] sm:$0xff]
    %v73 = vld [vmem:[#allocation5 + $0x60] sm:$0xff]
    %v74 = vld [vmem:[#allocation5 + $0x68] sm:$0xff]
    %v75 = vld [vmem:[#allocation5 + $0x70] sm:$0xff]
    %v76 = vld [vmem:[#allocation5 + $0x78] sm:$0xff]
    %v77 = vld [vmem:[%s2] sm:$0x1]
    %v79 = vlaneseq
    %v80 = vshrl.u32 %v79, 7
    %v81 = vsub.s32 0, %v80
    %v82 = vrot.slane %v77, %v81
    %84 = vmatprep.subr.mxu0 0.0
    %85 = vmatpush1.msra.mxu0 %v61
    %86 = vmatprep.subr.mxu0 0.0
    %87 = vmatpush1.msra.mxu0 %v62
    %88 = vmatprep.subr.mxu0 0.0
    %89 = vmatpush1.msra.mxu0 %v63
    %90 = vmatprep.subr.mxu0 0.0
    %91 = vmatpush1.msra.mxu0 %v64
    %92 = vmatprep.subr.mxu0 0.0
    %93 = vmatpush1.msra.mxu0 %v65
    %94 = vmatprep.subr.mxu0 0.0
    %95 = vmatpush1.msra.mxu0 %v66
    %96 = vmatprep.subr.mxu0 0.0
    %97 = vmatpush1.msra.mxu0 %v67
    %98 = vmatprep.subr.mxu0 0.0
    %99 = vmatpush1.msra.mxu0 %v68
    %100 = vmatprep.subr.mxu0 0.0
    %101 = vmatpush1.msra.mxu0 %v69
    %102 = vmatprep.subr.mxu0 0.0
    %103 = vmatpush1.msra.mxu0 %v70
    %104 = vmatprep.subr.mxu0 0.0
    %105 = vmatpush1.msra.mxu0 %v71
    %106 = vmatprep.subr.mxu0 0.0
    %107 = vmatpush1.msra.mxu0 %v72
    %108 = vmatprep.subr.mxu0 0.0
    %109 = vmatpush1.msra.mxu0 %v73
    %110 = vmatprep.subr.mxu0 0.0
    %111 = vmatpush1.msra.mxu0 %v74
    %112 = vmatprep.subr.mxu0 0.0
    %113 = vmatpush1.msra.mxu0 %v75
    %114 = vmatprep.subr.mxu0 0.0
    %115 = vmatpush1.msra.mxu0 %v76
    %116 = vmatprep.subr.mxu0 0.0
    %117 = vmatpush1.msra.mxu0 0.0
    %118 = vmatprep.subr.mxu0 0.0
    %119 = vmatpush1.msra.mxu0 0.0
    %120 = vmatprep.subr.mxu0 0.0
    %121 = vmatpush1.msra.mxu0 0.0
    %122 = vmatprep.subr.mxu0 0.0
    %123 = vmatpush1.msra.mxu0 0.0
    %124 = vmatprep.subr.mxu0 0.0
    %125 = vmatpush1.msra.mxu0 0.0
    %126 = vmatprep.subr.mxu0 0.0
    %127 = vmatpush1.msra.mxu0 0.0
    %128 = vmatprep.subr.mxu0 0.0
    %129 = vmatpush1.msra.mxu0 0.0
    %130 = vmatprep.subr.mxu0 0.0
    %131 = vmatpush1.msra.mxu0 0.0
    %132 = vmatprep.subr.mxu0 0.0
    %133 = vmatpush1.msra.mxu0 0.0
    %134 = vmatprep.subr.mxu0 0.0
    %135 = vmatpush1.msra.mxu0 0.0
    %136 = vmatprep.subr.mxu0 0.0
    %137 = vmatpush1.msra.mxu0 0.0
    %138 = vmatprep.subr.mxu0 0.0
    %139 = vmatpush1.msra.mxu0 0.0
    %140 = vmatprep.subr.mxu0 0.0
    %141 = vmatpush1.msra.mxu0 0.0
    %142 = vmatprep.subr.mxu0 0.0
    %143 = vmatpush1.msra.mxu0 0.0
    %144 = vmatprep.subr.mxu0 0.0
    %145 = vmatpush1.msra.mxu0 0.0
    %146 = vmatprep.subr.mxu0 0.0
    %147 = vmatpush1.msra.mxu0 0.0
    %148 = vmatprep.mubr.f32.mxu0 0.0
    %149 = vmatmul.mubr.f32.gmra.mrb[0].mxu0 %v59
    %v150 = vpop.f32.mrb[0].mxu0
    %v151 = vadd.f32 %v82, %v150
    %v152 = vpop.f32.mrb[0].mxu0
    %153 = vmatprep.mubr.f32.mxu0 0.0
    %154 = vmatmul.mubr.f32.gmra.mrb[0].mxu0 %v60
    %v155 = vpop.f32.mrb[0].mxu0
    %v156 = vadd.f32 %v82, %v155
    %v157 = vpop.f32.mrb[0].mxu0
    %158 = vdwg.mxu0
    %v159 = vmax.f32 %v151, 0.0
    %v160 = vmax.f32 %v156, 0.0
    %v161 = vld [vmem:[#allocation7] sm:$0xff]
    %v162 = vld [vmem:[#allocation7 + $0x8] sm:$0xff]
    %v163 = vld [vmem:[#allocation7 + $0x10] sm:$0xff]
    %v164 = vld [vmem:[#allocation7 + $0x18] sm:$0xff]
    %v165 = vld [vmem:[#allocation7 + $0x20] sm:$0xff]
    %v166 = vld [vmem:[#allocation7 + $0x28] sm:$0xff]
    %v167 = vld [vmem:[#allocation7 + $0x30] sm:$0xff]
    %v168 = vld [vmem:[#allocation7 + $0x38] sm:$0xff]
    %v169 = vld [vmem:[#allocation7 + $0x40] sm:$0xff]
    %v170 = vld [vmem:[#allocation7 + $0x48] sm:$0xff]
    %v171 = vld [vmem:[#allocation7 + $0x50] sm:$0xff]
    %v172 = vld [vmem:[#allocation7 + $0x58] sm:$0xff]
    %v173 = vld [vmem:[#allocation7 + $0x60] sm:$0xff]
    %v174 = vld [vmem:[#allocation7 + $0x68] sm:$0xff]
    %v175 = vld [vmem:[#allocation7 + $0x70] sm:$0xff]
    %v176 = vld [vmem:[#allocation7 + $0x78] sm:$0xff]
    %177 = vmatprep.subr.mxu0 0.0
    %178 = vmatpush1.msra.mxu0 %v161
    %179 = vmatprep.subr.mxu0 0.0
    %180 = vmatpush1.msra.mxu0 %v162
    %181 = vmatprep.subr.mxu0 0.0
    %182 = vmatpush1.msra.mxu0 %v163
    %183 = vmatprep.subr.mxu0 0.0
    %184 = vmatpush1.msra.mxu0 %v164
    %185 = vmatprep.subr.mxu0 0.0
    %186 = vmatpush1.msra.mxu0 %v165
    %187 = vmatprep.subr.mxu0 0.0
    %188 = vmatpush1.msra.mxu0 %v166
    %189 = vmatprep.subr.mxu0 0.0
    %190 = vmatpush1.msra.mxu0 %v167
    %191 = vmatprep.subr.mxu0 0.0
    %192 = vmatpush1.msra.mxu0 %v168
    %193 = vmatprep.subr.mxu0 0.0
    %194 = vmatpush1.msra.mxu0 %v169
    %195 = vmatprep.subr.mxu0 0.0
    %196 = vmatpush1.msra.mxu0 %v170
    %197 = vmatprep.subr.mxu0 0.0
    %198 = vmatpush1.msra.mxu0 %v171
    %199 = vmatprep.subr.mxu0 0.0
    %200 = vmatpush1.msra.mxu0 %v172
    %201 = vmatprep.subr.mxu0 0.0
    %202 = vmatpush1.msra.mxu0 %v173
    %203 = vmatprep.subr.mxu0 0.0
    %204 = vmatpush1.msra.mxu0 %v174
    %205 = vmatprep.subr.mxu0 0.0
    %206 = vmatpush1.msra.mxu0 %v175
    %207 = vmatprep.subr.mxu0 0.0
    %208 = vmatpush1.msra.mxu0 %v176
    %209 = vmatprep.subr.mxu0 0.0
    %210 = vmatpush1.msra.mxu0 0.0
    %211 = vmatprep.subr.mxu0 0.0
    %212 = vmatpush1.msra.mxu0 0.0
    %213 = vmatprep.subr.mxu0 0.0
    %214 = vmatpush1.msra.mxu0 0.0
    %215 = vmatprep.subr.mxu0 0.0
    %216 = vmatpush1.msra.mxu0 0.0
    %217 = vmatprep.subr.mxu0 0.0
    %218 = vmatpush1.msra.mxu0 0.0
    %219 = vmatprep.subr.mxu0 0.0
    %220 = vmatpush1.msra.mxu0 0.0
    %221 = vmatprep.subr.mxu0 0.0
    %222 = vmatpush1.msra.mxu0 0.0
    %223 = vmatprep.subr.mxu0 0.0
    %224 = vmatpush1.msra.mxu0 0.0
    %225 = vmatprep.subr.mxu0 0.0
    %226 = vmatpush1.msra.mxu0 0.0
    %227 = vmatprep.subr.mxu0 0.0
    %228 = vmatpush1.msra.mxu0 0.0
    %229 = vmatprep.subr.mxu0 0.0
    %230 = vmatpush1.msra.mxu0 0.0
    %231 = vmatprep.subr.mxu0 0.0
    %232 = vmatpush1.msra.mxu0 0.0
    %233 = vmatprep.subr.mxu0 0.0
    %234 = vmatpush1.msra.mxu0 0.0
    %235 = vmatprep.subr.mxu0 0.0
    %236 = vmatpush1.msra.mxu0 0.0
    %237 = vmatprep.subr.mxu0 0.0
    %238 = vmatpush1.msra.mxu0 0.0
    %239 = vmatprep.subr.mxu0 0.0
    %240 = vmatpush1.msra.mxu0 0.0
    %241 = vmatprep.mubr.f32.mxu0 0.0
    %242 = vmatmul.mubr.f32.gmra.mrb[0].mxu0 %v159
    %v243 = vpop.f32.mrb[0].mxu0
    %v244 = vadd.f32 0.0, %v243
    %v245 = vpop.f32.mrb[0].mxu0
    %246 = vmatprep.mubr.f32.mxu0 0.0
    %247 = vmatmul.mubr.f32.gmra.mrb[0].mxu0 %v160
    %v248 = vpop.f32.mrb[0].mxu0
    %v249 = vadd.f32 0.0, %v248
    %v250 = vpop.f32.mrb[0].mxu0
    %251 = vdwg.mxu0
    %252 = vst [vmem:[#allocation8] sm:$0xff] %v244
    %253 = vst [vmem:[#allocation8 + $0x8] sm:$0xff] %v249
    // Predicated region
    $region30: #{tpu_custom_call.1} parent=1 // pred_check
      _
    $region31: #{tpu_custom_call.1} parent=1 // pred_check_branch
      %255 = sbr.rel (0) target = $region33
    $region32: #{tpu_custom_call.1} parent=1 // pred_region
      %s257 = ssub.s32 256, 256
      %258 = vsyncadd [#allocation4], %s257
      %s259 = sshll.u32 [#allocation8], 4
      %s260 = int_to_ptr.vmem [resolvable:$true] %s259
      %265 = dma.vmem_to_hbm [thread:$0]  %s260, 256, %s4, [#allocation4], 128, 128, 8
    $region33: #{tpu_custom_call.1} parent=1 // pred_fallthru
      _
    // Predicated region
    $region34: #{tpu_custom_call.1} parent=1 // pred_check
      _
    $region35: #{tpu_custom_call.1} parent=1 // pred_check_branch
      %267 = sbr.rel (0) target = $region37
    $region36: #{tpu_custom_call.1} parent=1 // pred_region
      %268 = dma.done [#allocation4], 256
    $region37: #{tpu_custom_call.1} parent=1 // pred_fallthru
      _
    %269 = vsyncpa [#allocation3], 1
    %270 = vsyncpa [#allocation6], 1
    %271 = vsyncpa [#allocation4], 1

</llo_original>
